<compile_context>
chip_gen: v7x
topology: tpu7x:2x2x1
jax: 0.10.0
libtpu: 0.0.40
codegen_flags: <defaults>
</compile_context>

<pallas_src>
import jax
import jax.numpy as jnp
from jax.experimental import pallas as pl
from jax.experimental.pallas import tpu as pltpu


_L_TILE_MAX = 2048   # lanes per k-step (f32: 4 MiB per 512-row input buffer)
_R_MAX = 512         # rows per row-block (multiple of 128 -> lane-dense math)


def _round_up(x, m):
    return ((x + m - 1) // m) * m


def _make_kernel(R, L_tile, L, n_l, fold, mask_last):
    """Builds the kernel body with all tiling parameters baked in statically."""
    inv_L = float(1.0 / L)
    n_chunks = L_tile // 128 if fold else 1

    def kernel(x_ref, mx_ref, av_ref, max_scr, sum_scr):
        k = pl.program_id(1)

        @pl.when(k == 0)
        def _init():
            max_scr[...] = jnp.full(max_scr.shape, -jnp.inf, jnp.float32)
            sum_scr[...] = jnp.zeros(sum_scr.shape, jnp.float32)

        xf = x_ref[...].astype(jnp.float32)          # (R, L_tile)

        if mask_last:
            # Last L-block may be zero/garbage padded; neutralize padded lanes.
            lane = jax.lax.broadcasted_iota(jnp.int32, (R, L_tile), 1)
            valid = (k * L_tile + lane) < L
            x_max = jnp.where(valid, xf, -jnp.inf)
            x_sum = jnp.where(valid, xf, 0.0)
        else:
            x_max = xf
            x_sum = xf

        if fold:
            # VPU-only fold of the L_tile lanes down to 128 lanes.
            m = x_max[:, 0:128]
            s = x_sum[:, 0:128]
            for c in range(1, n_chunks):
                sl = slice(c * 128, (c + 1) * 128)
                m = jnp.maximum(m, x_max[:, sl])
                s = s + x_sum[:, sl]
        else:
            m = x_max
            s = x_sum

        max_scr[...] = jnp.maximum(max_scr[...], m)
        sum_scr[...] = sum_scr[...] + s

        @pl.when(k == n_l - 1)
        def _finalize():
            # Single cross-lane reduce per row block.
            mx = jnp.max(max_scr[...], axis=-1, keepdims=True)           # (R, 1)
            av = jnp.sum(sum_scr[...], axis=-1, keepdims=True) * inv_L   # (R, 1)
            mx_ref[...] = mx.astype(mx_ref.dtype)
            av_ref[...] = av.astype(av_ref.dtype)

    return kernel


def adaptive_concat_pool1d(x):
    """x: (N, C, L) -> (N, 2*C, 1) == torch.cat([AdaptiveMaxPool1d(1), AdaptiveAvgPool1d(1)], 1)."""
    N, C, L = x.shape
    NR = N * C
    x2d = x.reshape(NR, L)

    # --- L tiling (reduction axis, lanes) ---
    if L <= _L_TILE_MAX:
        L_tile = L          # single block; block == full dim, so no lane padding
        n_l = 1
    else:
        L_tile = _L_TILE_MAX
        n_l = pl.cdiv(L, L_tile)
    mask_last = (n_l * L_tile) != L
    fold = (L_tile % 128 == 0) and (L_tile >= 256)
    acc_w = 128 if fold else L_tile

    # --- row tiling (N*C flattened, sublanes) ---
    if NR <= 128:
        R = 128
    else:
        # aim for >=2 row blocks so both v7x TensorCores get work
        R = min(_R_MAX, _round_up(pl.cdiv(NR, 2), 128))
    n_rb = pl.cdiv(NR, R)
    NR_pad = n_rb * R

    kernel = _make_kernel(R, L_tile, L, n_l, fold, mask_last)

    mx_col, av_col = pl.pallas_call(
        kernel,
        out_shape=(
            jax.ShapeDtypeStruct((NR_pad, 1), x.dtype),
            jax.ShapeDtypeStruct((NR_pad, 1), x.dtype),
        ),
        grid_spec=pltpu.PrefetchScalarGridSpec(
            num_scalar_prefetch=0,
            grid=(n_rb, n_l),
            in_specs=[pl.BlockSpec((R, L_tile), lambda i, k: (i, k))],
            out_specs=[
                pl.BlockSpec((R, 1), lambda i, k: (i, 0)),
                pl.BlockSpec((R, 1), lambda i, k: (i, 0)),
            ],
            scratch_shapes=[
                pltpu.VMEM((R, acc_w), jnp.float32),   # running max
                pltpu.VMEM((R, acc_w), jnp.float32),   # running sum
            ],
        ),
        compiler_params=pltpu.CompilerParams(
            dimension_semantics=("parallel", "arbitrary"),
        ),
    )(x2d)

    # Drop padded rows, restore (N, C, 1), and concat [max, mean] on channel dim.
    mx = mx_col[:NR, 0].reshape(N, C, 1)
    av = av_col[:NR, 0].reshape(N, C, 1)
    return jnp.concatenate([mx, av], axis=1).astype(x.dtype)


if __name__ == "__main__":
    key = jax.random.PRNGKey(0)
    k1, k2 = jax.random.split(key)

    # Small shape consistent with the module: (batch=2, channels=4, length=16).
    N, C, L = 2, 4, 16
    x = jax.random.normal(k1, (N, C, L), dtype=jnp.float32)
    out = adaptive_concat_pool1d(x)
    jax.block_until_ready(out)

    ref = jnp.concatenate(
        [jnp.max(x, axis=-1, keepdims=True), jnp.mean(x, axis=-1, keepdims=True)],
        axis=1,
    )
    assert out.shape == (N, 2 * C, 1), out.shape
    assert jnp.allclose(out, ref, atol=1e-5, rtol=1e-5)

    # Second case: exercises L tiling with a remainder block and row padding.
    N2, C2, L2 = 3, 5, 2500
    x2 = jax.random.normal(k2, (N2, C2, L2), dtype=jnp.float32)
    out2 = adaptive_concat_pool1d(x2)
    jax.block_until_ready(out2)

    ref2 = jnp.concatenate(
        [jnp.max(x2, axis=-1, keepdims=True), jnp.mean(x2, axis=-1, keepdims=True)],
        axis=1,
    )
    assert out2.shape == (N2, 2 * C2, 1), out2.shape
    assert jnp.allclose(out2, ref2, atol=1e-4, rtol=1e-4)

    print("KERNEL_OK")
</pallas_src>

<mosaic_0001>
module attributes {stable_mosaic.version = 11 : i64} {
  func.func @kernel(%arg0: i32, %arg1: i32, %arg2: memref<128x16xf32, #tpu.memory_space<vmem>>, %arg3: memref<128x1xf32, #tpu.memory_space<vmem>>, %arg4: memref<128x1xf32, #tpu.memory_space<vmem>>, %arg5: memref<128x16xf32, #tpu.memory_space<vmem>>, %arg6: memref<128x16xf32, #tpu.memory_space<vmem>>) attributes {dimension_semantics = [#tpu.dimension_semantics<parallel>, #tpu.dimension_semantics<arbitrary>], iteration_bounds = array<i64: 1, 1>, scalar_prefetch = 0 : i64, scratch_operands = 2 : i64, tpu.core_type = #tpu.core_type<tc>, window_params = [{transform_indices = @transform_0, window_bounds = array<i64: 128, 16>}, {transform_indices = @transform_1, window_bounds = array<i64: 128, 1>}, {transform_indices = @transform_2, window_bounds = array<i64: 128, 1>}]} {
    %c0_i32 = arith.constant 0 : i32
    %0 = arith.cmpi eq, %arg1, %c0_i32 : i32
    %1 = arith.extui %0 : i1 to i32
    %c0_i32_0 = arith.constant 0 : i32
    %2 = arith.cmpi ne, %1, %c0_i32_0 : i32
    scf.if %2 {
      %cst = arith.constant 0xFF800000 : f32
      %13 = vector.broadcast %cst : f32 to vector<128x16xf32>
      %c0_12 = arith.constant 0 : index
      %c0_13 = arith.constant 0 : index
      %14 = vector.load %arg5[%c0_12, %c0_13] : memref<128x16xf32, #tpu.memory_space<vmem>>, vector<128x16xf32>
      tpu.vector_store %arg5[%c0_12, %c0_13], %13 {strides = array<i32>} : memref<128x16xf32, #tpu.memory_space<vmem>>, vector<128x16xf32>,
      %cst_14 = arith.constant 0.000000e+00 : f32
      %15 = vector.broadcast %cst_14 : f32 to vector<128x16xf32>
      %c0_15 = arith.constant 0 : index
      %c0_16 = arith.constant 0 : index
      %16 = vector.load %arg6[%c0_15, %c0_16] : memref<128x16xf32, #tpu.memory_space<vmem>>, vector<128x16xf32>
      tpu.vector_store %arg6[%c0_15, %c0_16], %15 {strides = array<i32>} : memref<128x16xf32, #tpu.memory_space<vmem>>, vector<128x16xf32>,
    } else {
    }
    %c0 = arith.constant 0 : index
    %c0_1 = arith.constant 0 : index
    %3 = vector.load %arg2[%c0, %c0_1] : memref<128x16xf32, #tpu.memory_space<vmem>>, vector<128x16xf32>
    %c0_2 = arith.constant 0 : index
    %c0_3 = arith.constant 0 : index
    %4 = vector.load %arg5[%c0_2, %c0_3] : memref<128x16xf32, #tpu.memory_space<vmem>>, vector<128x16xf32>
    %5 = arith.maximumf %4, %3 : vector<128x16xf32>
    %c0_4 = arith.constant 0 : index
    %c0_5 = arith.constant 0 : index
    %6 = vector.load %arg5[%c0_4, %c0_5] : memref<128x16xf32, #tpu.memory_space<vmem>>, vector<128x16xf32>
    tpu.vector_store %arg5[%c0_4, %c0_5], %5 {strides = array<i32>} : memref<128x16xf32, #tpu.memory_space<vmem>>, vector<128x16xf32>,
    %c0_6 = arith.constant 0 : index
    %c0_7 = arith.constant 0 : index
    %7 = vector.load %arg6[%c0_6, %c0_7] : memref<128x16xf32, #tpu.memory_space<vmem>>, vector<128x16xf32>
    %8 = arith.addf %7, %3 : vector<128x16xf32>
    %c0_8 = arith.constant 0 : index
    %c0_9 = arith.constant 0 : index
    %9 = vector.load %arg6[%c0_8, %c0_9] : memref<128x16xf32, #tpu.memory_space<vmem>>, vector<128x16xf32>
    tpu.vector_store %arg6[%c0_8, %c0_9], %8 {strides = array<i32>} : memref<128x16xf32, #tpu.memory_space<vmem>>, vector<128x16xf32>,
    %c0_i32_10 = arith.constant 0 : i32
    %10 = arith.cmpi eq, %arg1, %c0_i32_10 : i32
    %11 = arith.extui %10 : i1 to i32
    %c0_i32_11 = arith.constant 0 : i32
    %12 = arith.cmpi ne, %11, %c0_i32_11 : i32
    scf.if %12 {
      %c0_12 = arith.constant 0 : index
      %c0_13 = arith.constant 0 : index
      %13 = vector.load %arg5[%c0_12, %c0_13] : memref<128x16xf32, #tpu.memory_space<vmem>>, vector<128x16xf32>
      %cst = arith.constant dense<0xFF800000> : vector<128xf32>
      %14 = vector.multi_reduction <maximumf>, %13, %cst [1] : vector<128x16xf32> to vector<128xf32>
      %15 = vector.shape_cast %14 : vector<128xf32> to vector<128x1xf32>
      %c0_14 = arith.constant 0 : index
      %c0_15 = arith.constant 0 : index
      %16 = vector.load %arg6[%c0_14, %c0_15] : memref<128x16xf32, #tpu.memory_space<vmem>>, vector<128x16xf32>
      %cst_16 = arith.constant dense<0.000000e+00> : vector<128xf32>
      %17 = vector.multi_reduction <add>, %16, %cst_16 [1] : vector<128x16xf32> to vector<128xf32>
      %18 = vector.shape_cast %17 : vector<128xf32> to vector<128x1xf32>
      %cst_17 = arith.constant 6.250000e-02 : f32
      %19 = vector.broadcast %cst_17 : f32 to vector<128x1xf32>
      %20 = arith.mulf %18, %19 : vector<128x1xf32>
      %c0_18 = arith.constant 0 : index
      %c0_19 = arith.constant 0 : index
      %21 = vector.load %arg3[%c0_18, %c0_19] : memref<128x1xf32, #tpu.memory_space<vmem>>, vector<128x1xf32>
      tpu.vector_store %arg3[%c0_18, %c0_19], %15 {strides = array<i32>} : memref<128x1xf32, #tpu.memory_space<vmem>>, vector<128x1xf32>,
      %c0_20 = arith.constant 0 : index
      %c0_21 = arith.constant 0 : index
      %22 = vector.load %arg4[%c0_20, %c0_21] : memref<128x1xf32, #tpu.memory_space<vmem>>, vector<128x1xf32>
      tpu.vector_store %arg4[%c0_20, %c0_21], %20 {strides = array<i32>} : memref<128x1xf32, #tpu.memory_space<vmem>>, vector<128x1xf32>,
    } else {
    }
    return
  }
  func.func @transform_0(%arg0: i32, %arg1: i32) -> (i32, i32) {
    %c0_i32 = arith.constant 0 : i32
    return %arg0, %arg1 : i32, i32
  }
  func.func @transform_1(%arg0: i32, %arg1: i32) -> (i32, i32) {
    %c0_i32 = arith.constant 0 : i32
    %c0_i32_0 = arith.constant 0 : i32
    return %arg0, %c0_i32 : i32, i32
  }
  func.func @transform_2(%arg0: i32, %arg1: i32) -> (i32, i32) {
    %c0_i32 = arith.constant 0 : i32
    %c0_i32_0 = arith.constant 0 : i32
    return %arg0, %c0_i32 : i32, i32
  }
}

</mosaic_0001>

<llo_original>
// kernel: tpu_custom_call.1
$region0: #{tpu_custom_call.1}
  #allocation0 [shape = 'u32[]', space=smem, size = 0x4, offset = 0x4, fixed_abs, tag = 'smem constant byte address 0x4 - core index']
  #allocation1 [shape = 'u32[144,128]{1,0:T(1,128)}', space=vmem, size = 0x12000, scoped, tag = 'internal scratch']
  #allocation2 [shape = 'f32[128,16]{1,0:T(8,128)}', space=vmem, size = 0x10000, scoped, tag = 'scratch operand']
  #allocation3 [shape = 'f32[128,16]{1,0:T(8,128)}', space=vmem, size = 0x10000, scoped, tag = 'scratch operand']
  %s0 = inlined_call_operand.hbm [shape: f32[8,16], index: 0, kind: input, shape index: {}]
  %s1 = inlined_call_operand.vmem [shape: f32[128,1], index: 1, kind: output, shape index: {0}]
  %s2 = inlined_call_operand.vmem [shape: f32[128,1], index: 2, kind: output, shape index: {1}]
  %3 = xla_tuple %s1, %s2
  %s4 = sld [smem:[#allocation0]]
  $region34: #{tpu_custom_call.1} parent=0
    _
  %s6 = ssub.s32 1, %s4
  %s7 = scalar_select 0, %s6, %s4
  $region1: #{tpu_custom_call.1} parent=0
    #allocation4 [shape = 'u8[65536]{0}', space=vmem, size = 0x10000, scoped, tag = 'input window, operand 0, single buffered']
    #allocation5 [shape = 's32[1]{0}', space=sflag, size = 0x4, scoped, tag = 'scoped memory for tpu_custom_call.1']
    %8 = vsyncpa [#allocation5], 0
    // Predicated region
    $region2: #{tpu_custom_call.1} parent=1 // pred_check
      _
    $region3: #{tpu_custom_call.1} parent=1 // pred_check_branch
      %10 = sbr.rel (0) target = $region5
    $region4: #{tpu_custom_call.1} parent=1 // pred_region
      %s12 = ssub.s32 2048, 128
      %13 = vsyncadd [#allocation5], %s12
      %s14 = sshll.u32 [#allocation4], 4
      %s15 = int_to_ptr.vmem [resolvable:$true] %s14
      %20 = dma.hbm_to_vmem [thread:$0]  %s0, 128, %s15, [#allocation5], 128, 128, 8
    $region5: #{tpu_custom_call.1} parent=1 // pred_fallthru
      _
    // Predicated region
    $region6: #{tpu_custom_call.1} parent=1 // pred_check
      _
    $region7: #{tpu_custom_call.1} parent=1 // pred_check_branch
      %22 = sbr.rel (0) target = $region9
    $region8: #{tpu_custom_call.1} parent=1 // pred_region
      %23 = dma.done [#allocation5], 2048
    $region9: #{tpu_custom_call.1} parent=1 // pred_fallthru
      _
    %p24 = scmp.eq.s32.totalorder 0, 0
    // Predicated region
    $region10: #{tpu_custom_call.1} parent=1 // pred_check
      %p25 = pneg %p24
    $region11: #{tpu_custom_call.1} parent=1 // pred_check_branch
      %27 = sbr.rel (%p25) target = $region13
    $region12: #{tpu_custom_call.1} parent=1 // pred_region
      %vm28 = vcmask 130048
      %29 = vst.msk [vmem:[#allocation2] sm:$0xff] %vm28, -inf
      %30 = vst.msk [vmem:[#allocation2 + $0x8] sm:$0xff] %vm28, -inf
      %31 = vst.msk [vmem:[#allocation2 + $0x10] sm:$0xff] %vm28, -inf
      %32 = vst.msk [vmem:[#allocation2 + $0x18] sm:$0xff] %vm28, -inf
      %33 = vst.msk [vmem:[#allocation2 + $0x20] sm:$0xff] %vm28, -inf
      %34 = vst.msk [vmem:[#allocation2 + $0x28] sm:$0xff] %vm28, -inf
      %35 = vst.msk [vmem:[#allocation2 + $0x30] sm:$0xff] %vm28, -inf
      %36 = vst.msk [vmem:[#allocation2 + $0x38] sm:$0xff] %vm28, -inf
      %37 = vst.msk [vmem:[#allocation2 + $0x40] sm:$0xff] %vm28, -inf
      %38 = vst.msk [vmem:[#allocation2 + $0x48] sm:$0xff] %vm28, -inf
      %39 = vst.msk [vmem:[#allocation2 + $0x50] sm:$0xff] %vm28, -inf
      %40 = vst.msk [vmem:[#allocation2 + $0x58] sm:$0xff] %vm28, -inf
      %41 = vst.msk [vmem:[#allocation2 + $0x60] sm:$0xff] %vm28, -inf
      %42 = vst.msk [vmem:[#allocation2 + $0x68] sm:$0xff] %vm28, -inf
      %43 = vst.msk [vmem:[#allocation2 + $0x70] sm:$0xff] %vm28, -inf
      %44 = vst.msk [vmem:[#allocation2 + $0x78] sm:$0xff] %vm28, -inf
      %45 = vst.msk [vmem:[#allocation3] sm:$0xff] %vm28, 0.0
      %46 = vst.msk [vmem:[#allocation3 + $0x8] sm:$0xff] %vm28, 0.0
      %47 = vst.msk [vmem:[#allocation3 + $0x10] sm:$0xff] %vm28, 0.0
      %48 = vst.msk [vmem:[#allocation3 + $0x18] sm:$0xff] %vm28, 0.0
      %49 = vst.msk [vmem:[#allocation3 + $0x20] sm:$0xff] %vm28, 0.0
      %50 = vst.msk [vmem:[#allocation3 + $0x28] sm:$0xff] %vm28, 0.0
      %51 = vst.msk [vmem:[#allocation3 + $0x30] sm:$0xff] %vm28, 0.0
      %52 = vst.msk [vmem:[#allocation3 + $0x38] sm:$0xff] %vm28, 0.0
      %53 = vst.msk [vmem:[#allocation3 + $0x40] sm:$0xff] %vm28, 0.0
      %54 = vst.msk [vmem:[#allocation3 + $0x48] sm:$0xff] %vm28, 0.0
      %55 = vst.msk [vmem:[#allocation3 + $0x50] sm:$0xff] %vm28, 0.0
      %56 = vst.msk [vmem:[#allocation3 + $0x58] sm:$0xff] %vm28, 0.0
      %57 = vst.msk [vmem:[#allocation3 + $0x60] sm:$0xff] %vm28, 0.0
      %58 = vst.msk [vmem:[#allocation3 + $0x68] sm:$0xff] %vm28, 0.0
      %59 = vst.msk [vmem:[#allocation3 + $0x70] sm:$0xff] %vm28, 0.0
      %60 = vst.msk [vmem:[#allocation3 + $0x78] sm:$0xff] %vm28, 0.0
    $region13: #{tpu_custom_call.1} parent=1 // pred_fallthru
      _
    %v61 = vld [vmem:[#allocation4] sm:$0xff]
    %v62 = vld [vmem:[#allocation4 + $0x8] sm:$0xff]
    %v63 = vld [vmem:[#allocation4 + $0x10] sm:$0xff]
    %v64 = vld [vmem:[#allocation4 + $0x18] sm:$0xff]
    %v65 = vld [vmem:[#allocation4 + $0x20] sm:$0xff]
    %v66 = vld [vmem:[#allocation4 + $0x28] sm:$0xff]
    %v67 = vld [vmem:[#allocation4 + $0x30] sm:$0xff]
    %v68 = vld [vmem:[#allocation4 + $0x38] sm:$0xff]
    %v69 = vld [vmem:[#allocation4 + $0x40] sm:$0xff]
    %v70 = vld [vmem:[#allocation4 + $0x48] sm:$0xff]
    %v71 = vld [vmem:[#allocation4 + $0x50] sm:$0xff]
    %v72 = vld [vmem:[#allocation4 + $0x58] sm:$0xff]
    %v73 = vld [vmem:[#allocation4 + $0x60] sm:$0xff]
    %v74 = vld [vmem:[#allocation4 + $0x68] sm:$0xff]
    %v75 = vld [vmem:[#allocation4 + $0x70] sm:$0xff]
    %v76 = vld [vmem:[#allocation4 + $0x78] sm:$0xff]
    %v77 = vld [vmem:[#allocation2] sm:$0xff]
    %v78 = vld [vmem:[#allocation2 + $0x8] sm:$0xff]
    %v79 = vld [vmem:[#allocation2 + $0x10] sm:$0xff]
    %v80 = vld [vmem:[#allocation2 + $0x18] sm:$0xff]
    %v81 = vld [vmem:[#allocation2 + $0x20] sm:$0xff]
    %v82 = vld [vmem:[#allocation2 + $0x28] sm:$0xff]
    %v83 = vld [vmem:[#allocation2 + $0x30] sm:$0xff]
    %v84 = vld [vmem:[#allocation2 + $0x38] sm:$0xff]
    %v85 = vld [vmem:[#allocation2 + $0x40] sm:$0xff]
    %v86 = vld [vmem:[#allocation2 + $0x48] sm:$0xff]
    %v87 = vld [vmem:[#allocation2 + $0x50] sm:$0xff]
    %v88 = vld [vmem:[#allocation2 + $0x58] sm:$0xff]
    %v89 = vld [vmem:[#allocation2 + $0x60] sm:$0xff]
    %v90 = vld [vmem:[#allocation2 + $0x68] sm:$0xff]
    %v91 = vld [vmem:[#allocation2 + $0x70] sm:$0xff]
    %v92 = vld [vmem:[#allocation2 + $0x78] sm:$0xff]
    %v93 = vmax.f32 %v77, %v61
    %v94 = vmax.f32 %v78, %v62
    %v95 = vmax.f32 %v79, %v63
    %v96 = vmax.f32 %v80, %v64
    %v97 = vmax.f32 %v81, %v65
    %v98 = vmax.f32 %v82, %v66
    %v99 = vmax.f32 %v83, %v67
    %v100 = vmax.f32 %v84, %v68
    %v101 = vmax.f32 %v85, %v69
    %v102 = vmax.f32 %v86, %v70
    %v103 = vmax.f32 %v87, %v71
    %v104 = vmax.f32 %v88, %v72
    %v105 = vmax.f32 %v89, %v73
    %v106 = vmax.f32 %v90, %v74
    %v107 = vmax.f32 %v91, %v75
    %v108 = vmax.f32 %v92, %v76
    %vm109 = vcmask 130048
    %110 = vst.msk [vmem:[#allocation2] sm:$0xff] %vm109, %v93
    %111 = vst.msk [vmem:[#allocation2 + $0x8] sm:$0xff] %vm109, %v94
    %112 = vst.msk [vmem:[#allocation2 + $0x10] sm:$0xff] %vm109, %v95
    %113 = vst.msk [vmem:[#allocation2 + $0x18] sm:$0xff] %vm109, %v96
    %114 = vst.msk [vmem:[#allocation2 + $0x20] sm:$0xff] %vm109, %v97
    %115 = vst.msk [vmem:[#allocation2 + $0x28] sm:$0xff] %vm109, %v98
    %116 = vst.msk [vmem:[#allocation2 + $0x30] sm:$0xff] %vm109, %v99
    %117 = vst.msk [vmem:[#allocation2 + $0x38] sm:$0xff] %vm109, %v100
    %118 = vst.msk [vmem:[#allocation2 + $0x40] sm:$0xff] %vm109, %v101
    %119 = vst.msk [vmem:[#allocation2 + $0x48] sm:$0xff] %vm109, %v102
    %120 = vst.msk [vmem:[#allocation2 + $0x50] sm:$0xff] %vm109, %v103
    %121 = vst.msk [vmem:[#allocation2 + $0x58] sm:$0xff] %vm109, %v104
    %122 = vst.msk [vmem:[#allocation2 + $0x60] sm:$0xff] %vm109, %v105
    %123 = vst.msk [vmem:[#allocation2 + $0x68] sm:$0xff] %vm109, %v106
    %124 = vst.msk [vmem:[#allocation2 + $0x70] sm:$0xff] %vm109, %v107
    %125 = vst.msk [vmem:[#allocation2 + $0x78] sm:$0xff] %vm109, %v108
    %v126 = vld [vmem:[#allocation3] sm:$0xff]
    %v127 = vld [vmem:[#allocation3 + $0x8] sm:$0xff]
    %v128 = vld [vmem:[#allocation3 + $0x10] sm:$0xff]
    %v129 = vld [vmem:[#allocation3 + $0x18] sm:$0xff]
    %v130 = vld [vmem:[#allocation3 + $0x20] sm:$0xff]
    %v131 = vld [vmem:[#allocation3 + $0x28] sm:$0xff]
    %v132 = vld [vmem:[#allocation3 + $0x30] sm:$0xff]
    %v133 = vld [vmem:[#allocation3 + $0x38] sm:$0xff]
    %v134 = vld [vmem:[#allocation3 + $0x40] sm:$0xff]
    %v135 = vld [vmem:[#allocation3 + $0x48] sm:$0xff]
    %v136 = vld [vmem:[#allocation3 + $0x50] sm:$0xff]
    %v137 = vld [vmem:[#allocation3 + $0x58] sm:$0xff]
    %v138 = vld [vmem:[#allocation3 + $0x60] sm:$0xff]
    %v139 = vld [vmem:[#allocation3 + $0x68] sm:$0xff]
    %v140 = vld [vmem:[#allocation3 + $0x70] sm:$0xff]
    %v141 = vld [vmem:[#allocation3 + $0x78] sm:$0xff]
    %v142 = vadd.f32 %v126, %v61
    %v143 = vadd.f32 %v127, %v62
    %v144 = vadd.f32 %v128, %v63
    %v145 = vadd.f32 %v129, %v64
    %v146 = vadd.f32 %v130, %v65
    %v147 = vadd.f32 %v131, %v66
    %v148 = vadd.f32 %v132, %v67
    %v149 = vadd.f32 %v133, %v68
    %v150 = vadd.f32 %v134, %v69
    %v151 = vadd.f32 %v135, %v70
    %v152 = vadd.f32 %v136, %v71
    %v153 = vadd.f32 %v137, %v72
    %v154 = vadd.f32 %v138, %v73
    %v155 = vadd.f32 %v139, %v74
    %v156 = vadd.f32 %v140, %v75
    %v157 = vadd.f32 %v141, %v76
    %158 = vst.msk [vmem:[#allocation3] sm:$0xff] %vm109, %v142
    %159 = vst.msk [vmem:[#allocation3 + $0x8] sm:$0xff] %vm109, %v143
    %160 = vst.msk [vmem:[#allocation3 + $0x10] sm:$0xff] %vm109, %v144
    %161 = vst.msk [vmem:[#allocation3 + $0x18] sm:$0xff] %vm109, %v145
    %162 = vst.msk [vmem:[#allocation3 + $0x20] sm:$0xff] %vm109, %v146
    %163 = vst.msk [vmem:[#allocation3 + $0x28] sm:$0xff] %vm109, %v147
    %164 = vst.msk [vmem:[#allocation3 + $0x30] sm:$0xff] %vm109, %v148
    %165 = vst.msk [vmem:[#allocation3 + $0x38] sm:$0xff] %vm109, %v149
    %166 = vst.msk [vmem:[#allocation3 + $0x40] sm:$0xff] %vm109, %v150
    %167 = vst.msk [vmem:[#allocation3 + $0x48] sm:$0xff] %vm109, %v151
    %168 = vst.msk [vmem:[#allocation3 + $0x50] sm:$0xff] %vm109, %v152
    %169 = vst.msk [vmem:[#allocation3 + $0x58] sm:$0xff] %vm109, %v153
    %170 = vst.msk [vmem:[#allocation3 + $0x60] sm:$0xff] %vm109, %v154
    %171 = vst.msk [vmem:[#allocation3 + $0x68] sm:$0xff] %vm109, %v155
    %172 = vst.msk [vmem:[#allocation3 + $0x70] sm:$0xff] %vm109, %v156
    %173 = vst.msk [vmem:[#allocation3 + $0x78] sm:$0xff] %vm109, %v157
    // Predicated region
    $region14: #{tpu_custom_call.1} parent=1 // pred_check
      %p174 = pneg %p24
    $region15: #{tpu_custom_call.1} parent=1 // pred_check_branch
      %176 = sbr.rel (%p174) target = $region17
    $region16: #{tpu_custom_call.1} parent=1 // pred_region
      %v177 = vld [vmem:[#allocation2] sm:$0xff]
      %v178 = vld [vmem:[#allocation2 + $0x8] sm:$0xff]
      %v179 = vld [vmem:[#allocation2 + $0x10] sm:$0xff]
      %v180 = vld [vmem:[#allocation2 + $0x18] sm:$0xff]
      %v181 = vld [vmem:[#allocation2 + $0x20] sm:$0xff]
      %v182 = vld [vmem:[#allocation2 + $0x28] sm:$0xff]
      %v183 = vld [vmem:[#allocation2 + $0x30] sm:$0xff]
      %v184 = vld [vmem:[#allocation2 + $0x38] sm:$0xff]
      %v185 = vld [vmem:[#allocation2 + $0x40] sm:$0xff]
      %v186 = vld [vmem:[#allocation2 + $0x48] sm:$0xff]
      %v187 = vld [vmem:[#allocation2 + $0x50] sm:$0xff]
      %v188 = vld [vmem:[#allocation2 + $0x58] sm:$0xff]
      %v189 = vld [vmem:[#allocation2 + $0x60] sm:$0xff]
      %v190 = vld [vmem:[#allocation2 + $0x68] sm:$0xff]
      %v191 = vld [vmem:[#allocation2 + $0x70] sm:$0xff]
      %v192 = vld [vmem:[#allocation2 + $0x78] sm:$0xff]
      %v193 = vsel %vm109, %v177, -inf
      %194 = vmax.xlane.f32.xlu0 %v193
      %v195 = vpop.xlane.xlu0 %194
      %v196 = vsel %vm109, %v178, -inf
      %197 = vmax.xlane.f32.xlu0 %v196
      %v198 = vpop.xlane.xlu0 %197
      %v199 = vsel %vm109, %v179, -inf
      %200 = vmax.xlane.f32.xlu0 %v199
      %v201 = vpop.xlane.xlu0 %200
      %v202 = vsel %vm109, %v180, -inf
      %203 = vmax.xlane.f32.xlu0 %v202
      %v204 = vpop.xlane.xlu0 %203
      %v205 = vsel %vm109, %v181, -inf
      %206 = vmax.xlane.f32.xlu0 %v205
      %v207 = vpop.xlane.xlu0 %206
      %v208 = vsel %vm109, %v182, -inf
      %209 = vmax.xlane.f32.xlu0 %v208
      %v210 = vpop.xlane.xlu0 %209
      %v211 = vsel %vm109, %v183, -inf
      %212 = vmax.xlane.f32.xlu0 %v211
      %v213 = vpop.xlane.xlu0 %212
      %v214 = vsel %vm109, %v184, -inf
      %215 = vmax.xlane.f32.xlu0 %v214
      %v216 = vpop.xlane.xlu0 %215
      %v217 = vsel %vm109, %v185, -inf
      %218 = vmax.xlane.f32.xlu0 %v217
      %v219 = vpop.xlane.xlu0 %218
      %v220 = vsel %vm109, %v186, -inf
      %221 = vmax.xlane.f32.xlu0 %v220
      %v222 = vpop.xlane.xlu0 %221
      %v223 = vsel %vm109, %v187, -inf
      %224 = vmax.xlane.f32.xlu0 %v223
      %v225 = vpop.xlane.xlu0 %224
      %v226 = vsel %vm109, %v188, -inf
      %227 = vmax.xlane.f32.xlu0 %v226
      %v228 = vpop.xlane.xlu0 %227
      %v229 = vsel %vm109, %v189, -inf
      %230 = vmax.xlane.f32.xlu0 %v229
      %v231 = vpop.xlane.xlu0 %230
      %v232 = vsel %vm109, %v190, -inf
      %233 = vmax.xlane.f32.xlu0 %v232
      %v234 = vpop.xlane.xlu0 %233
      %v235 = vsel %vm109, %v191, -inf
      %236 = vmax.xlane.f32.xlu0 %v235
      %v237 = vpop.xlane.xlu0 %236
      %v238 = vsel %vm109, %v192, -inf
      %239 = vmax.xlane.f32.xlu0 %v238
      %v240 = vpop.xlane.xlu0 %239
      %v241 = vld [vmem:[#allocation3] sm:$0xff]
      %v242 = vld [vmem:[#allocation3 + $0x8] sm:$0xff]
      %v243 = vld [vmem:[#allocation3 + $0x10] sm:$0xff]
      %v244 = vld [vmem:[#allocation3 + $0x18] sm:$0xff]
      %v245 = vld [vmem:[#allocation3 + $0x20] sm:$0xff]
      %v246 = vld [vmem:[#allocation3 + $0x28] sm:$0xff]
      %v247 = vld [vmem:[#allocation3 + $0x30] sm:$0xff]
      %v248 = vld [vmem:[#allocation3 + $0x38] sm:$0xff]
      %v249 = vld [vmem:[#allocation3 + $0x40] sm:$0xff]
      %v250 = vld [vmem:[#allocation3 + $0x48] sm:$0xff]
      %v251 = vld [vmem:[#allocation3 + $0x50] sm:$0xff]
      %v252 = vld [vmem:[#allocation3 + $0x58] sm:$0xff]
      %v253 = vld [vmem:[#allocation3 + $0x60] sm:$0xff]
      %v254 = vld [vmem:[#allocation3 + $0x68] sm:$0xff]
      %v255 = vld [vmem:[#allocation3 + $0x70] sm:$0xff]
      %v256 = vld [vmem:[#allocation3 + $0x78] sm:$0xff]
      %v257 = vsel %vm109, %v241, 0.0
      %258 = vadd.xlane.f32.xlu0 %v257
      %v259 = vpop.xlane.xlu0 %258
      %v260 = vsel %vm109, %v242, 0.0
      %261 = vadd.xlane.f32.xlu0 %v260
      %v262 = vpop.xlane.xlu0 %261
      %v263 = vsel %vm109, %v243, 0.0
      %264 = vadd.xlane.f32.xlu0 %v263
      %v265 = vpop.xlane.xlu0 %264
      %v266 = vsel %vm109, %v244, 0.0
      %267 = vadd.xlane.f32.xlu0 %v266
      %v268 = vpop.xlane.xlu0 %267
      %v269 = vsel %vm109, %v245, 0.0
      %270 = vadd.xlane.f32.xlu0 %v269
      %v271 = vpop.xlane.xlu0 %270
      %v272 = vsel %vm109, %v246, 0.0
      %273 = vadd.xlane.f32.xlu0 %v272
      %v274 = vpop.xlane.xlu0 %273
      %v275 = vsel %vm109, %v247, 0.0
      %276 = vadd.xlane.f32.xlu0 %v275
      %v277 = vpop.xlane.xlu0 %276
      %v278 = vsel %vm109, %v248, 0.0
      %279 = vadd.xlane.f32.xlu0 %v278
      %v280 = vpop.xlane.xlu0 %279
      %v281 = vsel %vm109, %v249, 0.0
      %282 = vadd.xlane.f32.xlu0 %v281
      %v283 = vpop.xlane.xlu0 %282
      %v284 = vsel %vm109, %v250, 0.0
      %285 = vadd.xlane.f32.xlu0 %v284
      %v286 = vpop.xlane.xlu0 %285
      %v287 = vsel %vm109, %v251, 0.0
      %288 = vadd.xlane.f32.xlu0 %v287
      %v289 = vpop.xlane.xlu0 %288
      %v290 = vsel %vm109, %v252, 0.0
      %291 = vadd.xlane.f32.xlu0 %v290
      %v292 = vpop.xlane.xlu0 %291
      %v293 = vsel %vm109, %v253, 0.0
      %294 = vadd.xlane.f32.xlu0 %v293
      %v295 = vpop.xlane.xlu0 %294
      %v296 = vsel %vm109, %v254, 0.0
      %297 = vadd.xlane.f32.xlu0 %v296
      %v298 = vpop.xlane.xlu0 %297
      %v299 = vsel %vm109, %v255, 0.0
      %300 = vadd.xlane.f32.xlu0 %v299
      %v301 = vpop.xlane.xlu0 %300
      %v302 = vsel %vm109, %v256, 0.0
      %303 = vadd.xlane.f32.xlu0 %v302
      %v304 = vpop.xlane.xlu0 %303
      %v305 = vmul.f32 %v259, 0.0625
      %v306 = vmul.f32 %v262, 0.0625
      %v307 = vmul.f32 %v265, 0.0625
      %v308 = vmul.f32 %v268, 0.0625
      %v309 = vmul.f32 %v271, 0.0625
      %v310 = vmul.f32 %v274, 0.0625
      %v311 = vmul.f32 %v277, 0.0625
      %v312 = vmul.f32 %v280, 0.0625
      %v313 = vmul.f32 %v283, 0.0625
      %v314 = vmul.f32 %v286, 0.0625
      %v315 = vmul.f32 %v289, 0.0625
      %v316 = vmul.f32 %v292, 0.0625
      %v317 = vmul.f32 %v295, 0.0625
      %v318 = vmul.f32 %v298, 0.0625
      %v319 = vmul.f32 %v301, 0.0625
      %v320 = vmul.f32 %v304, 0.0625
      %vm321 = vcmask 7168
      %322 = vst.msk [vmem:[%s1] sm:$0xff] %vm321, %v195
      %323 = vst.msk [vmem:[%s1 + $0x8] sm:$0xff] %vm321, %v198
      %324 = vst.msk [vmem:[%s1 + $0x10] sm:$0xff] %vm321, %v201
      %325 = vst.msk [vmem:[%s1 + $0x18] sm:$0xff] %vm321, %v204
      %326 = vst.msk [vmem:[%s1 + $0x20] sm:$0xff] %vm321, %v207
      %327 = vst.msk [vmem:[%s1 + $0x28] sm:$0xff] %vm321, %v210
      %328 = vst.msk [vmem:[%s1 + $0x30] sm:$0xff] %vm321, %v213
      %329 = vst.msk [vmem:[%s1 + $0x38] sm:$0xff] %vm321, %v216
      %330 = vst.msk [vmem:[%s1 + $0x40] sm:$0xff] %vm321, %v219
      %331 = vst.msk [vmem:[%s1 + $0x48] sm:$0xff] %vm321, %v222
      %332 = vst.msk [vmem:[%s1 + $0x50] sm:$0xff] %vm321, %v225
      %333 = vst.msk [vmem:[%s1 + $0x58] sm:$0xff] %vm321, %v228
      %334 = vst.msk [vmem:[%s1 + $0x60] sm:$0xff] %vm321, %v231
      %335 = vst.msk [vmem:[%s1 + $0x68] sm:$0xff] %vm321, %v234
      %336 = vst.msk [vmem:[%s1 + $0x70] sm:$0xff] %vm321, %v237
      %337 = vst.msk [vmem:[%s1 + $0x78] sm:$0xff] %vm321, %v240
      %338 = vst.msk [vmem:[%s2] sm:$0xff] %vm321, %v305
      %339 = vst.msk [vmem:[%s2 + $0x8] sm:$0xff] %vm321, %v306
      %340 = vst.msk [vmem:[%s2 + $0x10] sm:$0xff] %vm321, %v307
      %341 = vst.msk [vmem:[%s2 + $0x18] sm:$0xff] %vm321, %v308
      %342 = vst.msk [vmem:[%s2 + $0x20] sm:$0xff] %vm321, %v309
      %343 = vst.msk [vmem:[%s2 + $0x28] sm:$0xff] %vm321, %v310
      %344 = vst.msk [vmem:[%s2 + $0x30] sm:$0xff] %vm321, %v311
      %345 = vst.msk [vmem:[%s2 + $0x38] sm:$0xff] %vm321, %v312
      %346 = vst.msk [vmem:[%s2 + $0x40] sm:$0xff] %vm321, %v313
      %347 = vst.msk [vmem:[%s2 + $0x48] sm:$0xff] %vm321, %v314
      %348 = vst.msk [vmem:[%s2 + $0x50] sm:$0xff] %vm321, %v315
      %349 = vst.msk [vmem:[%s2 + $0x58] sm:$0xff] %vm321, %v316
      %350 = vst.msk [vmem:[%s2 + $0x60] sm:$0xff] %vm321, %v317
      %351 = vst.msk [vmem:[%s2 + $0x68] sm:$0xff] %vm321, %v318
      %352 = vst.msk [vmem:[%s2 + $0x70] sm:$0xff] %vm321, %v319
      %353 = vst.msk [vmem:[%s2 + $0x78] sm:$0xff] %vm321, %v320
    $region17: #{tpu_custom_call.1} parent=1 // pred_fallthru
      _
    // Predicated region
    $region18: #{tpu_custom_call.1} parent=1 // pred_check
      _
    $region19: #{tpu_custom_call.1} parent=1 // pred_check_branch
      %355 = sbr.rel (0) target = $region21
    $region20: #{tpu_custom_call.1} parent=1 // pred_region
      _
    $region21: #{tpu_custom_call.1} parent=1 // pred_fallthru
      _
    // Predicated region
    $region22: #{tpu_custom_call.1} parent=1 // pred_check
      _
    $region23: #{tpu_custom_call.1} parent=1 // pred_check_branch
      %357 = sbr.rel (0) target = $region25
    $region24: #{tpu_custom_call.1} parent=1 // pred_region
      _
    $region25: #{tpu_custom_call.1} parent=1 // pred_fallthru
      _
    // Predicated region
    $region26: #{tpu_custom_call.1} parent=1 // pred_check
      _
    $region27: #{tpu_custom_call.1} parent=1 // pred_check_branch
      %359 = sbr.rel (0) target = $region29
    $region28: #{tpu_custom_call.1} parent=1 // pred_region
      _
    $region29: #{tpu_custom_call.1} parent=1 // pred_fallthru
      _
    // Predicated region
    $region30: #{tpu_custom_call.1} parent=1 // pred_check
      _
    $region31: #{tpu_custom_call.1} parent=1 // pred_check_branch
      %361 = sbr.rel (0) target = $region33
    $region32: #{tpu_custom_call.1} parent=1 // pred_region
      _
    $region33: #{tpu_custom_call.1} parent=1 // pred_fallthru
      _
    %362 = vsyncpa [#allocation5], 1

</llo_original>
